<compile_context>
chip_gen: v5e
topology: v5e:2x2
jax: 0.10.0
libtpu: 0.0.40
codegen_flags: <defaults>
</compile_context>

<pallas_src>
import jax
import jax.numpy as jnp
from jax.experimental import pallas as pl
from jax.experimental.pallas import tpu as pltpu

STATE_SPACE = 16     # FrozenLake-v0 observation_space.n
ACTION_SPACE = 4     # FrozenLake-v0 action_space.n
FEATURE_SPACE = 32
TILE_B = 512         # batch elements per grid step (lane-dim tile, multiple of 128)


def _build_fused_table(params, out_rows):
    """Fold W_in, b_in, ELU, W_out, b_out into one (out_rows, 2*S) table.

    Row layout (output features of the in-kernel dot):
      rows [0, F)           : state_feature_rep (pre-ELU)
      rows [F, 2F)          : next_state_feature_rep (pre-ELU)
      rows [2F, 2F+A)       : action-head logits
      rows [2F+A, out_rows) : exact zeros (loss slot + padding)
    Column layout (contraction dim):
      cols [0, S)  selected by the state one-hot, cols [S, 2S) by the next-state one-hot.
    b_out is folded into the state half only, so it is added exactly once.
    """
    w_in, b_in, w_out, b_out = params
    S, F = w_in.shape
    A = w_out.shape[1]
    feat = (w_in + b_in).astype(jnp.float32)                       # (S, F) = W_in[s] + b_in
    feat_elu = jnp.where(feat > 0, feat, jnp.exp(feat) - 1.0)      # ELU(alpha=1)
    logit_s = feat_elu @ w_out[0:F, :] + b_out                     # (S, A), bias folded here
    logit_ns = feat_elu @ w_out[F:2 * F, :]                        # (S, A)
    table = jnp.zeros((out_rows, 2 * S), jnp.float32)
    table = table.at[0:F, 0:S].set(feat.T)
    table = table.at[F:2 * F, S:2 * S].set(feat.T)
    table = table.at[2 * F:2 * F + A, 0:S].set(logit_s.T)
    table = table.at[2 * F:2 * F + A, S:2 * S].set(logit_ns.T)
    return table


def _make_kernel(S, F, A):
    def kernel(idx_ref, table_ref, out_ref):
        tb = out_ref.shape[1]
        s_row = idx_ref[0:1, :]          # (1, tb) int32 state ids      (lane-major batch)
        ns_row = idx_ref[1:2, :]         # (1, tb) next-state ids
        a_row = idx_ref[2:3, :]          # (1, tb) action ids

        # Combined one-hot, transposed: (2S, tb). Sublane iota vs sublane-broadcast rows.
        k_iota = jax.lax.broadcasted_iota(jnp.int32, (2 * S, tb), 0)
        target = jnp.where(k_iota < S, s_row, ns_row + S)
        onehot_t = (k_iota == target).astype(jnp.float32)

        # Single fused MXU dot: (out_rows, 2S) @ (2S, tb) -> packed slab (sf | nsf | logits | 0).
        slab = jnp.dot(table_ref[...], onehot_t, preferred_element_type=jnp.float32)

        # Softmax over the 4 action rows (dense over lanes).
        logits = slab[2 * F:2 * F + A, :]                        # (A, tb)
        m = jnp.max(logits, axis=0, keepdims=True)
        e = jnp.exp(logits - m)
        probs = e * pl.reciprocal(jnp.sum(e, axis=0, keepdims=True), approx=False)

        # CrossEntropy on the already-softmaxed probs (intentional double softmax).
        m2 = jnp.max(probs, axis=0, keepdims=True)
        lse = m2 + jnp.log(jnp.sum(jnp.exp(probs - m2), axis=0, keepdims=True))
        log_sm = probs - lse
        a_iota = jax.lax.broadcasted_iota(jnp.int32, (A, tb), 0)
        picked = jnp.where(a_iota == a_row, log_sm, 0.0)
        loss = -jnp.sum(picked, axis=0, keepdims=True)           # (1, tb)

        # Lane-dense packed write-back; overwrite the logit rows with probs, add the loss row.
        out_ref[...] = slab
        out_ref[2 * F:2 * F + A, :] = probs
        out_ref[2 * F + A:2 * F + A + 1, :] = loss
    return kernel


def inverse_model_forward(state_idx, next_state_idx, action, params, *, tile_b=TILE_B):
    """Batched forward. state_idx/next_state_idx/action: (B,) int arrays of discrete ids.

    Returns (state_feat (B,F), next_state_feat (B,F), pred_actions (B,A), loss (B,)).
    """
    w_in, b_in, w_out, b_out = params
    S, F = w_in.shape
    A = w_out.shape[1]
    assert tile_b % 128 == 0, "tile_b must be a multiple of 128 (lane width)"

    B = state_idx.shape[0]
    grid_b = pl.cdiv(B, tile_b)
    b_pad = grid_b * tile_b
    out_rows = ((2 * F + A + 1 + 7) // 8) * 8       # 72 for F=32, A=4

    # Lane-major indices: (3, B) -> pad batch to tile multiple, pad sublanes to 8.
    idx = jnp.stack([state_idx, next_state_idx, action]).astype(jnp.int32)
    if b_pad != B:
        idx = jnp.pad(idx, ((0, 0), (0, b_pad - B)))
    idx = jnp.pad(idx, ((8 - idx.shape[0], 0)[::-1], (0, 0)))    # (8, b_pad)

    table = _build_fused_table(params, out_rows)                 # (out_rows, 2S)

    packed = pl.pallas_call(
        _make_kernel(S, F, A),
        grid=(grid_b,),
        in_specs=[
            pl.BlockSpec((8, tile_b), lambda i: (0, i)),          # packed indices (lane-major)
            pl.BlockSpec((out_rows, 2 * S), lambda i: (0, 0)),    # fused weight table
        ],
        out_specs=pl.BlockSpec((out_rows, tile_b), lambda i: (0, i)),
        out_shape=jax.ShapeDtypeStruct((out_rows, b_pad), jnp.float32),
        compiler_params=pltpu.CompilerParams(
            dimension_semantics=("parallel",)),                   # shards batch on v7x's 2 TCs
    )(idx, table)

    sf = packed[0:F, 0:B].T                          # state_feature_rep (pre-ELU)
    nsf = packed[F:2 * F, 0:B].T                     # next_state_feature_rep (pre-ELU)
    probs = packed[2 * F:2 * F + A, 0:B].T           # pred_actions (softmax)
    loss = packed[2 * F + A, 0:B]                    # per-transition CE loss
    return sf, nsf, probs, loss


def init_params(key, feature_space=FEATURE_SPACE):
    """Deterministic init mimicking torch.nn.Linear default U(-1/sqrt(fan_in), 1/sqrt(fan_in))."""
    k1, k2, k3, k4 = jax.random.split(key, 4)
    bound_in = 1.0 / (STATE_SPACE ** 0.5)
    bound_out = 1.0 / ((2 * feature_space) ** 0.5)
    w_in = jax.random.uniform(k1, (STATE_SPACE, feature_space), jnp.float32,
                              -bound_in, bound_in)
    b_in = jax.random.uniform(k2, (1, feature_space), jnp.float32,
                              -bound_in, bound_in)
    w_out = jax.random.uniform(k3, (2 * feature_space, ACTION_SPACE), jnp.float32,
                               -bound_out, bound_out)
    b_out = jax.random.uniform(k4, (1, ACTION_SPACE), jnp.float32,
                               -bound_out, bound_out)
    return w_in, b_in, w_out, b_out


def reference_forward(state_idx, next_state_idx, action, params):
    """Pure-JAX reference for the correctness check."""
    w_in, b_in, w_out, b_out = params
    s = jax.nn.one_hot(state_idx, STATE_SPACE, dtype=jnp.float32)
    ns = jax.nn.one_hot(next_state_idx, STATE_SPACE, dtype=jnp.float32)
    sf = s @ w_in + b_in
    nsf = ns @ w_in + b_in
    comb = jnp.concatenate([sf, nsf], axis=-1)
    comb = jnp.where(comb > 0, comb, jnp.exp(comb) - 1.0)
    probs = jax.nn.softmax(comb @ w_out + b_out, axis=-1)
    log_sm = jax.nn.log_softmax(probs, axis=-1)            # intentional double softmax
    onehot_a = jax.nn.one_hot(action, ACTION_SPACE, dtype=jnp.float32)
    loss = -jnp.sum(log_sm * onehot_a, axis=-1)
    return sf, nsf, probs, loss


if __name__ == "__main__":
    key = jax.random.PRNGKey(0)
    kp, ks, kn, ka = jax.random.split(key, 4)
    params = init_params(kp)

    # Two tiles of TILE_B transitions -> grid=(2,), "parallel" (uses both TCs on v7x).
    B = 2 * TILE_B
    state_idx = jax.random.randint(ks, (B,), 0, STATE_SPACE, dtype=jnp.int32)
    next_state_idx = jax.random.randint(kn, (B,), 0, STATE_SPACE, dtype=jnp.int32)
    action = jax.random.randint(ka, (B,), 0, ACTION_SPACE, dtype=jnp.int32)

    sf, nsf, probs, loss = inverse_model_forward(state_idx, next_state_idx, action, params)
    jax.block_until_ready((sf, nsf, probs, loss))

    rsf, rnsf, rprobs, rloss = reference_forward(state_idx, next_state_idx, action, params)
    assert jnp.allclose(sf, rsf, atol=1e-5)
    assert jnp.allclose(nsf, rnsf, atol=1e-5)
    assert jnp.allclose(probs, rprobs, atol=1e-5)
    assert jnp.allclose(loss, rloss, atol=1e-5)

    print("KERNEL_OK")
</pallas_src>

<mosaic_0001>
module attributes {stable_mosaic.version = 11 : i64} {
  func.func @kernel(%arg0: i32, %arg1: memref<8x512xi32, #tpu.memory_space<vmem>>, %arg2: memref<72x32xf32, #tpu.memory_space<vmem>>, %arg3: memref<72x512xf32, #tpu.memory_space<vmem>>) attributes {dimension_semantics = [#tpu.dimension_semantics<parallel>], iteration_bounds = array<i64: 2>, scalar_prefetch = 0 : i64, scratch_operands = 0 : i64, tpu.core_type = #tpu.core_type<tc>, window_params = [{transform_indices = @transform_0, window_bounds = array<i64: 8, 512>}, {pipeline_mode = #tpu.pipeline_mode<synchronous>, transform_indices = @transform_1, window_bounds = array<i64: 72, 32>}, {transform_indices = @transform_2, window_bounds = array<i64: 72, 512>}]} {
    %c0 = arith.constant 0 : index
    %c0_0 = arith.constant 0 : index
    %0 = vector.load %arg1[%c0, %c0_0] : memref<8x512xi32, #tpu.memory_space<vmem>>, vector<1x512xi32>
    %c1 = arith.constant 1 : index
    %c0_1 = arith.constant 0 : index
    %1 = vector.load %arg1[%c1, %c0_1] : memref<8x512xi32, #tpu.memory_space<vmem>>, vector<1x512xi32>
    %c2 = arith.constant 2 : index
    %c0_2 = arith.constant 0 : index
    %2 = vector.load %arg1[%c2, %c0_2] : memref<8x512xi32, #tpu.memory_space<vmem>>, vector<1x512xi32>
    %3 = tpu.iota {dimensions = array<i32: 0>} : vector<32x512xi32>
    %c16_i32 = arith.constant 16 : i32
    %4 = vector.broadcast %c16_i32 : i32 to vector<32x512xi32>
    %5 = arith.cmpi slt, %3, %4 : vector<32x512xi32>
    %c16_i32_3 = arith.constant 16 : i32
    %6 = vector.broadcast %c16_i32_3 : i32 to vector<1x512xi32>
    %7 = arith.addi %1, %6 : vector<1x512xi32>
    %8 = vector.shape_cast %0 : vector<1x512xi32> to vector<1x512xi32>
    %9 = vector.broadcast %8 : vector<1x512xi32> to vector<32x512xi32>
    %10 = vector.shape_cast %7 : vector<1x512xi32> to vector<1x512xi32>
    %11 = vector.broadcast %10 : vector<1x512xi32> to vector<32x512xi32>
    %12 = arith.select %5, %9, %11 : vector<32x512xi1>, vector<32x512xi32>
    %13 = arith.cmpi eq, %3, %12 : vector<32x512xi32>
    %14 = arith.extui %13 : vector<32x512xi1> to vector<32x512xi32>
    %15 = arith.sitofp %14 : vector<32x512xi32> to vector<32x512xf32>
    %c0_4 = arith.constant 0 : index
    %c0_5 = arith.constant 0 : index
    %16 = vector.load %arg2[%c0_4, %c0_5] : memref<72x32xf32, #tpu.memory_space<vmem>>, vector<72x32xf32>
    %cst = arith.constant dense<0.000000e+00> : vector<72x512xf32>
    %17 = tpu.matmul %16, %15, %cst {dimension_numbers = #tpu.dot_dimension_numbers<[1], [0], [0], [1], [0, 0, 1, 1], [], []>} : vector<72x32xf32>, vector<32x512xf32>, vector<72x512xf32> -> vector<72x512xf32>
    %18 = vector.extract_strided_slice %17 {offsets = [64, 0], sizes = [4, 512], strides = [1, 1]} : vector<72x512xf32> to vector<4x512xf32>
    %cst_6 = arith.constant dense<0xFF800000> : vector<512xf32>
    %19 = vector.multi_reduction <maximumf>, %18, %cst_6 [0] : vector<4x512xf32> to vector<512xf32>
    %20 = vector.shape_cast %19 : vector<512xf32> to vector<1x512xf32>
    %21 = vector.broadcast %20 : vector<1x512xf32> to vector<4x512xf32>
    %22 = arith.subf %18, %21 : vector<4x512xf32>
    %23 = math.exp %22 : vector<4x512xf32>
    %cst_7 = arith.constant dense<0.000000e+00> : vector<512xf32>
    %24 = vector.multi_reduction <add>, %23, %cst_7 [0] : vector<4x512xf32> to vector<512xf32>
    %25 = vector.shape_cast %24 : vector<512xf32> to vector<1x512xf32>
    %26 = tpu.reciprocal %25 : vector<1x512xf32> -> vector<1x512xf32>
    %27 = vector.broadcast %26 : vector<1x512xf32> to vector<4x512xf32>
    %28 = arith.mulf %23, %27 : vector<4x512xf32>
    %cst_8 = arith.constant dense<0xFF800000> : vector<512xf32>
    %29 = vector.multi_reduction <maximumf>, %28, %cst_8 [0] : vector<4x512xf32> to vector<512xf32>
    %30 = vector.shape_cast %29 : vector<512xf32> to vector<1x512xf32>
    %31 = vector.broadcast %30 : vector<1x512xf32> to vector<4x512xf32>
    %32 = arith.subf %28, %31 : vector<4x512xf32>
    %33 = math.exp %32 : vector<4x512xf32>
    %cst_9 = arith.constant dense<0.000000e+00> : vector<512xf32>
    %34 = vector.multi_reduction <add>, %33, %cst_9 [0] : vector<4x512xf32> to vector<512xf32>
    %35 = vector.shape_cast %34 : vector<512xf32> to vector<1x512xf32>
    %36 = math.log %35 : vector<1x512xf32>
    %37 = arith.addf %30, %36 : vector<1x512xf32>
    %38 = vector.broadcast %37 : vector<1x512xf32> to vector<4x512xf32>
    %39 = arith.subf %28, %38 : vector<4x512xf32>
    %40 = tpu.iota {dimensions = array<i32: 0>} : vector<4x512xi32>
    %41 = vector.broadcast %2 : vector<1x512xi32> to vector<4x512xi32>
    %42 = arith.cmpi eq, %40, %41 : vector<4x512xi32>
    %cst_10 = arith.constant 0.000000e+00 : f32
    %43 = vector.broadcast %cst_10 : f32 to vector<4x512xf32>
    %44 = arith.select %42, %39, %43 : vector<4x512xi1>, vector<4x512xf32>
    %cst_11 = arith.constant dense<0.000000e+00> : vector<512xf32>
    %45 = vector.multi_reduction <add>, %44, %cst_11 [0] : vector<4x512xf32> to vector<512xf32>
    %46 = vector.shape_cast %45 : vector<512xf32> to vector<1x512xf32>
    %cst_12 = arith.constant 0.000000e+00 : f32
    %47 = vector.broadcast %cst_12 : f32 to vector<1x512xf32>
    %48 = arith.subf %47, %46 : vector<1x512xf32>
    %c0_13 = arith.constant 0 : index
    %c0_14 = arith.constant 0 : index
    %49 = vector.load %arg3[%c0_13, %c0_14] : memref<72x512xf32, #tpu.memory_space<vmem>>, vector<72x512xf32>
    tpu.vector_store %arg3[%c0_13, %c0_14], %17 {strides = array<i32>} : memref<72x512xf32, #tpu.memory_space<vmem>>, vector<72x512xf32>,
    %c64 = arith.constant 64 : index
    %c0_15 = arith.constant 0 : index
    %50 = vector.load %arg3[%c64, %c0_15] : memref<72x512xf32, #tpu.memory_space<vmem>>, vector<4x512xf32>
    tpu.vector_store %arg3[%c64, %c0_15], %28 {strides = array<i32>} : memref<72x512xf32, #tpu.memory_space<vmem>>, vector<4x512xf32>,
    %c68 = arith.constant 68 : index
    %c0_16 = arith.constant 0 : index
    %51 = vector.load %arg3[%c68, %c0_16] : memref<72x512xf32, #tpu.memory_space<vmem>>, vector<1x512xf32>
    tpu.vector_store %arg3[%c68, %c0_16], %48 {strides = array<i32>} : memref<72x512xf32, #tpu.memory_space<vmem>>, vector<1x512xf32>,
    return
  }
  func.func @transform_0(%arg0: i32) -> (i32, i32) {
    %c0_i32 = arith.constant 0 : i32
    %c0_i32_0 = arith.constant 0 : i32
    return %c0_i32, %arg0 : i32, i32
  }
  func.func @transform_1(%arg0: i32) -> (i32, i32) {
    %c0_i32 = arith.constant 0 : i32
    %c0_i32_0 = arith.constant 0 : i32
    %c0_i32_1 = arith.constant 0 : i32
    return %c0_i32, %c0_i32_0 : i32, i32
  }
  func.func @transform_2(%arg0: i32) -> (i32, i32) {
    %c0_i32 = arith.constant 0 : i32
    %c0_i32_0 = arith.constant 0 : i32
    return %c0_i32, %arg0 : i32, i32
  }
}

</mosaic_0001>

<llo_original>
// kernel: tpu_custom_call.1
$region0: #{tpu_custom_call.1}
  #allocation0 [shape = 'u32[]', space=smem, size = 0x4, offset = 0x4, fixed_abs, tag = 'smem constant byte address 0x4 - core index']
  #allocation1 [shape = 'u32[72,128]{1,0:T(1,128)}', space=vmem, size = 0x9000, scoped, tag = 'internal scratch']
  %s0 = inlined_call_operand.vmem [shape: s32[8,1024], index: 0, kind: input, shape index: {}]
  %s1 = inlined_call_operand.vmem [shape: f32[72,32], index: 1, kind: input, shape index: {}]
  %s2 = inlined_call_operand.hbm [shape: f32[72,1024], index: 2, kind: output, shape index: {}]
  %s3 = sld [smem:[#allocation0]]
  $region41: #{tpu_custom_call.1} parent=0
    _
  %s5 = ssub.s32 1, %s3
  %s6 = scalar_select 0, %s5, %s3
  $region1: #{tpu_custom_call.1} parent=0
    #allocation2 [shape = 'u8[294912]{0}', space=vmem, size = 0x48000, scoped, tag = 'output window, operand 0']
    #allocation3 [shape = 's32[2]{0}', space=sflag, size = 0x8, scoped, tag = 'scoped memory for tpu_custom_call.1']
    %7 = vsyncpa [#allocation3], 0
    %s8 = scalar_lea.sflag [#allocation3], 1
    %9 = vsyncpa %s8, 0
    loop: start=0, step=1, limit=4
    $region2: #{tpu_custom_call.1} parent=1 // loop_pre_header
      _
    $region3: #{tpu_custom_call.1} parent=1 // loop_header
      %s11 = sphi 0, %s15
      %p12 = scmp.ge.s32.totalorder %s11, 4
      %s21 = sphi 0, %s23
      %s24 = sphi 0, %s21
      %s25 = sphi 0, %s24
      %s41 = sphi 0, %s25
      %s45 = sphi 0, %s45
      %s47 = sphi 0, %s45
      %s48 = sphi 0, %s47
      %s62 = sphi 0, %s48
      %s68 = sphi 0, %s70
      %s71 = sphi 0, %s68
      %s72 = sphi 0, %s71
      %s88 = sphi 0, %s72
    $region4: #{tpu_custom_call.1} parent=1 // loop_header_branch
      %14 = sbr.rel (%p12) target = $region8
    $region5: #{tpu_custom_call.1} parent=1 // loop_body
      %s16 = ssub.s32 %s11, 1
      %s17 = ssub.s32 %s11, 2
      %s18 = sadd.s32 %s11, 1
      %s19 = ssub.s32 %s11, %s18
      %p20 = scmp.eq.s32.totalorder %s19, 0
      %s22 = sadd.s32 %s21, 1
      %s23 = scalar_select %p20, %s21, %s22
      %p26 = pneg %p20
      %p27 = scmp.eq.s32.totalorder %s11, 1
      %p28 = por %p26, %p27
      %p29 = scmp.ne.s32.totalorder %s21, %s24
      %p30 = scmp.eq.s32.totalorder %s11, 0
      %p31 = por %p29, %p30
      %p32 = scmp.ne.s32.totalorder %s21, %s24
      %p33 = scmp.eq.s32.totalorder %s16, 1
      %p34 = por %p32, %p33
      %p35 = scmp.ne.s32.totalorder %s24, %s25
      %p36 = scmp.eq.s32.totalorder %s16, 0
      %p37 = por %p35, %p36
      %p38 = scmp.ne.s32.totalorder %s24, %s25
      %p39 = scmp.eq.s32.totalorder %s17, 1
      %p40 = por %p38, %p39
      %p42 = scmp.ne.s32.totalorder %s25, %s41
      %p43 = scmp.eq.s32.totalorder %s17, 0
      %p44 = por %p42, %p43
      %s46 = sadd.s32 %s45, 1
      %p49 = scmp.eq.s32.totalorder %s11, 1
      %p50 = scmp.ne.s32.totalorder %s45, %s47
      %p51 = scmp.eq.s32.totalorder %s11, 0
      %p52 = por %p50, %p51
      %p53 = scmp.ne.s32.totalorder %s45, %s47
      %p54 = scmp.eq.s32.totalorder %s16, 1
      %p55 = por %p53, %p54
      %p56 = scmp.ne.s32.totalorder %s47, %s48
      %p57 = scmp.eq.s32.totalorder %s16, 0
      %p58 = por %p56, %p57
      %p59 = scmp.ne.s32.totalorder %s47, %s48
      %p60 = scmp.eq.s32.totalorder %s17, 1
      %p61 = por %p59, %p60
      %p63 = scmp.ne.s32.totalorder %s48, %s62
      %p64 = scmp.eq.s32.totalorder %s17, 0
      %p65 = por %p63, %p64
      %s66 = ssub.s32 %s11, %s18
      %p67 = scmp.eq.s32.totalorder %s66, 0
      %s69 = sadd.s32 %s68, 1
      %s70 = scalar_select %p67, %s68, %s69
      %p73 = pneg %p67
      %p74 = scmp.eq.s32.totalorder %s11, 1
      %p75 = por %p73, %p74
      %p76 = scmp.ne.s32.totalorder %s68, %s71
      %p77 = scmp.eq.s32.totalorder %s11, 0
      %p78 = por %p76, %p77
      %p79 = scmp.ne.s32.totalorder %s68, %s71
      %p80 = scmp.eq.s32.totalorder %s16, 1
      %p81 = por %p79, %p80
      %p82 = scmp.ne.s32.totalorder %s71, %s72
      %p83 = scmp.eq.s32.totalorder %s16, 0
      %p84 = por %p82, %p83
      %p85 = scmp.ne.s32.totalorder %s71, %s72
      %p86 = scmp.eq.s32.totalorder %s17, 1
      %p87 = por %p85, %p86
      %p89 = scmp.ne.s32.totalorder %s72, %s88
      %p90 = scmp.eq.s32.totalorder %s17, 0
      %p91 = por %p89, %p90
      %p92 = scmp.le.s32.totalorder 1, %s11
      %p93 = scmp.lt.s32.totalorder %s11, 3
      %p94 = pnand %p92, %p93
      %p95 = pneg %p94
      // Predicated region
      $region9: #{tpu_custom_call.1} parent=5 // pred_check
        _
      $region10: #{tpu_custom_call.1} parent=5 // pred_check_branch
        %97 = sbr.rel (%p94) target = $region12
      $region11: #{tpu_custom_call.1} parent=5 // pred_region
        %s98 = ssub.s32 %s11, 1
        // Predicated region
        $region13: #{tpu_custom_call.1} parent=11 // pred_check
          %p99 = pneg %p58
        $region14: #{tpu_custom_call.1} parent=11 // pred_check_branch
          %101 = sbr.rel (%p99) target = $region16
        $region15: #{tpu_custom_call.1} parent=11 // pred_region
          _
        $region16: #{tpu_custom_call.1} parent=11 // pred_fallthru
          _
      $region12: #{tpu_custom_call.1} parent=5 // pred_fallthru
        _
      %p102 = scmp.lt.s32.totalorder %s11, 2
      // Predicated region
      $region17: #{tpu_custom_call.1} parent=5 // pred_check
        %p103 = pneg %p102
      $region18: #{tpu_custom_call.1} parent=5 // pred_check_branch
        %105 = sbr.rel (%p103) target = $region20
      $region19: #{tpu_custom_call.1} parent=5 // pred_region
        // Predicated region
        $region21: #{tpu_custom_call.1} parent=19 // pred_check
          %p106 = pneg %p31
        $region22: #{tpu_custom_call.1} parent=19 // pred_check_branch
          %108 = sbr.rel (%p106) target = $region24
        $region23: #{tpu_custom_call.1} parent=19 // pred_region
          %s109 = smul.u32 4, %s11
          %p110 = scmp.lt.s32.totalorder %s109, 7
          %s111 = scalar_select %p110, %s109, 7
          %s112 = smul.addr %s111, 8
          %s113 = scalar_lea.vmem %s0, %s112
          %s114 = smul.u32 4, %s11
        $region24: #{tpu_custom_call.1} parent=19 // pred_fallthru
          _
      $region20: #{tpu_custom_call.1} parent=5 // pred_fallthru
        _
      %p115 = scmp.le.s32.totalorder 1, %s11
      %p116 = scmp.lt.s32.totalorder %s11, 3
      %p117 = pnand %p115, %p116
      %p118 = pneg %p117
      // Predicated region
      $region25: #{tpu_custom_call.1} parent=5 // pred_check
        _
      $region26: #{tpu_custom_call.1} parent=5 // pred_check_branch
        %120 = sbr.rel (%p117) target = $region28
      $region27: #{tpu_custom_call.1} parent=5 // pred_region
        %s121 = ssub.s32 %s11, 1
        %s122 = smul.u32 4, %s16
        %p123 = scmp.lt.s32.totalorder %s122, 7
        %s124 = scalar_select %p123, %s122, 7
        %s125 = smul.addr %s124, 8
        %s126 = scalar_lea.vmem %s0, %s125
        %p127 = pneg %p37
        %p128 = pneg %p34
        %p129 = pneg %p58
        %p130 = pneg %p55
        %p131 = pneg %p84
        %p132 = pneg %p81
        %s133 = sand.u32 %s71, 1
        %s134 = scalar_lea.sflag [#allocation3], %s133
        %s135 = sand.u32 %s71, 1
        %s136 = smul.addr %s135, 288
        %s137 = scalar_lea.vmem [#allocation2], %s136
        %s138 = smul.u32 4, %s16
        %p139 = scmp.lt.s32.totalorder %s138, 7
        %s140 = scalar_select %p139, %s138, 7
        %s141 = smul.addr %s140, 8
        %s142 = scalar_lea.vmem %s0, %s141
        %s143 = smul.u32 4, %s16
        %s144 = smul.u32 4, %s16
        %v145 = vld [vmem:[%s142] ss:$8 sm:$0xf]
        %s146 = scalar_lea.vmem %s142, 1
        %v147 = vld [vmem:[%s146] ss:$8 sm:$0xf]
        %s148 = scalar_lea.vmem %s142, 2
        %v149 = vld [vmem:[%s148] ss:$8 sm:$0xf]
        %v150 = vlaneseq
        %v151 = vshrl.u32 %v150, 7
        %v152 = vadd.s32 %v151, 8
        %v153 = vadd.s32 %v151, 16
        %v154 = vadd.s32 %v151, 24
        %vm155 = vcmp.lt.s32.totalorder %v151, 16
        %vm156 = vcmp.lt.s32.totalorder %v152, 16
        %vm157 = vcmp.lt.s32.totalorder %v153, 16
        %vm158 = vcmp.lt.s32.totalorder %v154, 16
        %v159 = vadd.s32 %v147, 16
        %v160 = vperm.slane %v145, 0
        %v161 = vperm.slane %v145, 1
        %v162 = vperm.slane %v145, 2
        %v163 = vperm.slane %v145, 3
        %v164 = vperm.slane %v159, 0
        %v165 = vperm.slane %v159, 1
        %v166 = vperm.slane %v159, 2
        %v167 = vperm.slane %v159, 3
        %v168 = vsel %vm155, %v160, %v164
        %v169 = vsel %vm155, %v161, %v165
        %v170 = vsel %vm155, %v162, %v166
        %v171 = vsel %vm155, %v163, %v167
        %v172 = vsel %vm156, %v160, %v164
        %v173 = vsel %vm156, %v161, %v165
        %v174 = vsel %vm156, %v162, %v166
        %v175 = vsel %vm156, %v163, %v167
        %v176 = vsel %vm157, %v160, %v164
        %v177 = vsel %vm157, %v161, %v165
        %v178 = vsel %vm157, %v162, %v166
        %v179 = vsel %vm157, %v163, %v167
        %v180 = vsel %vm158, %v160, %v164
        %v181 = vsel %vm158, %v161, %v165
        %v182 = vsel %vm158, %v162, %v166
        %v183 = vsel %vm158, %v163, %v167
        %vm184 = vcmp.eq.s32.totalorder %v151, %v168
        %vm185 = vcmp.eq.s32.totalorder %v151, %v169
        %vm186 = vcmp.eq.s32.totalorder %v151, %v170
        %vm187 = vcmp.eq.s32.totalorder %v151, %v171
        %vm188 = vcmp.eq.s32.totalorder %v152, %v172
        %vm189 = vcmp.eq.s32.totalorder %v152, %v173
        %vm190 = vcmp.eq.s32.totalorder %v152, %v174
        %vm191 = vcmp.eq.s32.totalorder %v152, %v175
        %vm192 = vcmp.eq.s32.totalorder %v153, %v176
        %vm193 = vcmp.eq.s32.totalorder %v153, %v177
        %vm194 = vcmp.eq.s32.totalorder %v153, %v178
        %vm195 = vcmp.eq.s32.totalorder %v153, %v179
        %vm196 = vcmp.eq.s32.totalorder %v154, %v180
        %vm197 = vcmp.eq.s32.totalorder %v154, %v181
        %vm198 = vcmp.eq.s32.totalorder %v154, %v182
        %vm199 = vcmp.eq.s32.totalorder %v154, %v183
        %v200 = vsel %vm184, 1, 0
        %v201 = vsel %vm185, 1, 0
        %v202 = vsel %vm186, 1, 0
        %v203 = vsel %vm187, 1, 0
        %v204 = vsel %vm188, 1, 0
        %v205 = vsel %vm189, 1, 0
        %v206 = vsel %vm190, 1, 0
        %v207 = vsel %vm191, 1, 0
        %v208 = vsel %vm192, 1, 0
        %v209 = vsel %vm193, 1, 0
        %v210 = vsel %vm194, 1, 0
        %v211 = vsel %vm195, 1, 0
        %v212 = vsel %vm196, 1, 0
        %v213 = vsel %vm197, 1, 0
        %v214 = vsel %vm198, 1, 0
        %v215 = vsel %vm199, 1, 0
        %v216 = vcvt.s32.f32 %v200
        %v217 = vcvt.s32.f32 %v201
        %v218 = vcvt.s32.f32 %v202
        %v219 = vcvt.s32.f32 %v203
        %v220 = vcvt.s32.f32 %v204
        %v221 = vcvt.s32.f32 %v205
        %v222 = vcvt.s32.f32 %v206
        %v223 = vcvt.s32.f32 %v207
        %v224 = vcvt.s32.f32 %v208
        %v225 = vcvt.s32.f32 %v209
        %v226 = vcvt.s32.f32 %v210
        %v227 = vcvt.s32.f32 %v211
        %v228 = vcvt.s32.f32 %v212
        %v229 = vcvt.s32.f32 %v213
        %v230 = vcvt.s32.f32 %v214
        %v231 = vcvt.s32.f32 %v215
        %v232 = vld [vmem:[%s1] sm:$0xff]
        %v233 = vld [vmem:[%s1 + $0x8] sm:$0xff]
        %v234 = vld [vmem:[%s1 + $0x10] sm:$0xff]
        %v235 = vld [vmem:[%s1 + $0x18] sm:$0xff]
        %v236 = vld [vmem:[%s1 + $0x20] sm:$0xff]
        %v237 = vld [vmem:[%s1 + $0x28] sm:$0xff]
        %v238 = vld [vmem:[%s1 + $0x30] sm:$0xff]
        %v239 = vld [vmem:[%s1 + $0x38] sm:$0xff]
        %v240 = vld [vmem:[%s1 + $0x40] sm:$0xff]
        %vm241 = vcmask 261120
        %v243 = vsel %vm241, %v232, 0
        %v246 = vsel %vm241, %v233, 0
        %v249 = vsel %vm241, %v234, 0
        %v252 = vsel %vm241, %v235, 0
        %v255 = vsel %vm241, %v236, 0
        %v258 = vsel %vm241, %v237, 0
        %v261 = vsel %vm241, %v238, 0
        %v264 = vsel %vm241, %v239, 0
        %v267 = vsel %vm241, %v240, 0
        %269 = vmatpush.msra.mxu0 0.0
        %270 = vmatpush.msra.mxu0 0.0
        %271 = vmatpush.msra.mxu0 0.0
        %272 = vmatpush.msra.mxu0 0.0
        %273 = vmatpush.msra.mxu0 0.0
        %274 = vmatpush.msra.mxu0 0.0
        %275 = vmatpush.msra.mxu0 0.0
        %276 = vmatpush.msra.mxu0 0.0
        %277 = vmatpush.msra.mxu0 0.0
        %278 = vmatpush.msra.mxu0 0.0
        %279 = vmatpush.msra.mxu0 0.0
        %280 = vmatpush.msra.mxu0 0.0
        %281 = vmatpush.msra.mxu0 %v228
        %282 = vmatpush.msra.mxu0 %v224
        %283 = vmatpush.msra.mxu0 %v220
        %284 = vmatpush.msra.mxu0 %v216
        %285 = vmatmul.f32.gmra.mxu0 %v243
        %v286 = vpop.f32.mrf.mxu0
        %v287 = vadd.f32 0.0, %v286
        %288 = vmatmul.f32.gmra.mxu0 %v246
        %v289 = vpop.f32.mrf.mxu0
        %v290 = vadd.f32 0.0, %v289
        %291 = vmatmul.f32.gmra.mxu0 %v249
        %v292 = vpop.f32.mrf.mxu0
        %v293 = vadd.f32 0.0, %v292
        %294 = vmatmul.f32.gmra.mxu0 %v252
        %v295 = vpop.f32.mrf.mxu0
        %v296 = vadd.f32 0.0, %v295
        %297 = vmatmul.f32.gmra.mxu0 %v255
        %v298 = vpop.f32.mrf.mxu0
        %v299 = vadd.f32 0.0, %v298
        %300 = vmatmul.f32.gmra.mxu0 %v258
        %v301 = vpop.f32.mrf.mxu0
        %v302 = vadd.f32 0.0, %v301
        %303 = vmatmul.f32.gmra.mxu0 %v261
        %v304 = vpop.f32.mrf.mxu0
        %v305 = vadd.f32 0.0, %v304
        %306 = vmatmul.f32.gmra.mxu0 %v264
        %v307 = vpop.f32.mrf.mxu0
        %v308 = vadd.f32 0.0, %v307
        %309 = vmatmul.f32.gmra.mxu0 %v267
        %v310 = vpop.f32.mrf.mxu0
        %v311 = vadd.f32 0.0, %v310
        %312 = vdwg.mxu0
        %313 = vmatpush.msra.mxu0 0.0
        %314 = vmatpush.msra.mxu0 0.0
        %315 = vmatpush.msra.mxu0 0.0
        %316 = vmatpush.msra.mxu0 0.0
        %317 = vmatpush.msra.mxu0 0.0
        %318 = vmatpush.msra.mxu0 0.0
        %319 = vmatpush.msra.mxu0 0.0
        %320 = vmatpush.msra.mxu0 0.0
        %321 = vmatpush.msra.mxu0 0.0
        %322 = vmatpush.msra.mxu0 0.0
        %323 = vmatpush.msra.mxu0 0.0
        %324 = vmatpush.msra.mxu0 0.0
        %325 = vmatpush.msra.mxu0 %v229
        %326 = vmatpush.msra.mxu0 %v225
        %327 = vmatpush.msra.mxu0 %v221
        %328 = vmatpush.msra.mxu0 %v217
        %329 = vmatmul.f32.gmra.mxu0 %v243
        %v330 = vpop.f32.mrf.mxu0
        %v331 = vadd.f32 0.0, %v330
        %332 = vmatmul.f32.gmra.mxu0 %v246
        %v333 = vpop.f32.mrf.mxu0
        %v334 = vadd.f32 0.0, %v333
        %335 = vmatmul.f32.gmra.mxu0 %v249
        %v336 = vpop.f32.mrf.mxu0
        %v337 = vadd.f32 0.0, %v336
        %338 = vmatmul.f32.gmra.mxu0 %v252
        %v339 = vpop.f32.mrf.mxu0
        %v340 = vadd.f32 0.0, %v339
        %341 = vmatmul.f32.gmra.mxu0 %v255
        %v342 = vpop.f32.mrf.mxu0
        %v343 = vadd.f32 0.0, %v342
        %344 = vmatmul.f32.gmra.mxu0 %v258
        %v345 = vpop.f32.mrf.mxu0
        %v346 = vadd.f32 0.0, %v345
        %347 = vmatmul.f32.gmra.mxu0 %v261
        %v348 = vpop.f32.mrf.mxu0
        %v349 = vadd.f32 0.0, %v348
        %350 = vmatmul.f32.gmra.mxu0 %v264
        %v351 = vpop.f32.mrf.mxu0
        %v352 = vadd.f32 0.0, %v351
        %353 = vmatmul.f32.gmra.mxu0 %v267
        %v354 = vpop.f32.mrf.mxu0
        %v355 = vadd.f32 0.0, %v354
        %356 = vdwg.mxu0
        %357 = vmatpush.msra.mxu0 0.0
        %358 = vmatpush.msra.mxu0 0.0
        %359 = vmatpush.msra.mxu0 0.0
        %360 = vmatpush.msra.mxu0 0.0
        %361 = vmatpush.msra.mxu0 0.0
        %362 = vmatpush.msra.mxu0 0.0
        %363 = vmatpush.msra.mxu0 0.0
        %364 = vmatpush.msra.mxu0 0.0
        %365 = vmatpush.msra.mxu0 0.0
        %366 = vmatpush.msra.mxu0 0.0
        %367 = vmatpush.msra.mxu0 0.0
        %368 = vmatpush.msra.mxu0 0.0
        %369 = vmatpush.msra.mxu0 %v230
        %370 = vmatpush.msra.mxu0 %v226
        %371 = vmatpush.msra.mxu0 %v222
        %372 = vmatpush.msra.mxu0 %v218
        %373 = vmatmul.f32.gmra.mxu0 %v243
        %v374 = vpop.f32.mrf.mxu0
        %v375 = vadd.f32 0.0, %v374
        %376 = vmatmul.f32.gmra.mxu0 %v246
        %v377 = vpop.f32.mrf.mxu0
        %v378 = vadd.f32 0.0, %v377
        %379 = vmatmul.f32.gmra.mxu0 %v249
        %v380 = vpop.f32.mrf.mxu0
        %v381 = vadd.f32 0.0, %v380
        %382 = vmatmul.f32.gmra.mxu0 %v252
        %v383 = vpop.f32.mrf.mxu0
        %v384 = vadd.f32 0.0, %v383
        %385 = vmatmul.f32.gmra.mxu0 %v255
        %v386 = vpop.f32.mrf.mxu0
        %v387 = vadd.f32 0.0, %v386
        %388 = vmatmul.f32.gmra.mxu0 %v258
        %v389 = vpop.f32.mrf.mxu0
        %v390 = vadd.f32 0.0, %v389
        %391 = vmatmul.f32.gmra.mxu0 %v261
        %v392 = vpop.f32.mrf.mxu0
        %v393 = vadd.f32 0.0, %v392
        %394 = vmatmul.f32.gmra.mxu0 %v264
        %v395 = vpop.f32.mrf.mxu0
        %v396 = vadd.f32 0.0, %v395
        %397 = vmatmul.f32.gmra.mxu0 %v267
        %v398 = vpop.f32.mrf.mxu0
        %v399 = vadd.f32 0.0, %v398
        %400 = vdwg.mxu0
        %401 = vmatpush.msra.mxu0 0.0
        %402 = vmatpush.msra.mxu0 0.0
        %403 = vmatpush.msra.mxu0 0.0
        %404 = vmatpush.msra.mxu0 0.0
        %405 = vmatpush.msra.mxu0 0.0
        %406 = vmatpush.msra.mxu0 0.0
        %407 = vmatpush.msra.mxu0 0.0
        %408 = vmatpush.msra.mxu0 0.0
        %409 = vmatpush.msra.mxu0 0.0
        %410 = vmatpush.msra.mxu0 0.0
        %411 = vmatpush.msra.mxu0 0.0
        %412 = vmatpush.msra.mxu0 0.0
        %413 = vmatpush.msra.mxu0 %v231
        %414 = vmatpush.msra.mxu0 %v227
        %415 = vmatpush.msra.mxu0 %v223
        %416 = vmatpush.msra.mxu0 %v219
        %417 = vmatmul.f32.gmra.mxu0 %v243
        %v418 = vpop.f32.mrf.mxu0
        %v419 = vadd.f32 0.0, %v418
        %420 = vmatmul.f32.gmra.mxu0 %v246
        %v421 = vpop.f32.mrf.mxu0
        %v422 = vadd.f32 0.0, %v421
        %423 = vmatmul.f32.gmra.mxu0 %v249
        %v424 = vpop.f32.mrf.mxu0
        %v425 = vadd.f32 0.0, %v424
        %426 = vmatmul.f32.gmra.mxu0 %v252
        %v427 = vpop.f32.mrf.mxu0
        %v428 = vadd.f32 0.0, %v427
        %429 = vmatmul.f32.gmra.mxu0 %v255
        %v430 = vpop.f32.mrf.mxu0
        %v431 = vadd.f32 0.0, %v430
        %432 = vmatmul.f32.gmra.mxu0 %v258
        %v433 = vpop.f32.mrf.mxu0
        %v434 = vadd.f32 0.0, %v433
        %435 = vmatmul.f32.gmra.mxu0 %v261
        %v436 = vpop.f32.mrf.mxu0
        %v437 = vadd.f32 0.0, %v436
        %438 = vmatmul.f32.gmra.mxu0 %v264
        %v439 = vpop.f32.mrf.mxu0
        %v440 = vadd.f32 0.0, %v439
        %441 = vmatmul.f32.gmra.mxu0 %v267
        %v442 = vpop.f32.mrf.mxu0
        %v443 = vadd.f32 0.0, %v442
        %444 = vdwg.mxu0
        %vm445 = vcmask 1043456
        %v446 = vsel %vm445, %v311, -inf
        %v447 = vrot.slane %v446, 4
        %v448 = vmax.f32 %v446, %v447
        %v449 = vrot.slane %v448, 2
        %v450 = vmax.f32 %v448, %v449
        %v451 = vrot.slane %v450, 1
        %v452 = vmax.f32 %v450, %v451
        %v453 = vsel %vm445, %v355, -inf
        %v454 = vrot.slane %v453, 4
        %v455 = vmax.f32 %v453, %v454
        %v456 = vrot.slane %v455, 2
        %v457 = vmax.f32 %v455, %v456
        %v458 = vrot.slane %v457, 1
        %v459 = vmax.f32 %v457, %v458
        %v460 = vsel %vm445, %v399, -inf
        %v461 = vrot.slane %v460, 4
        %v462 = vmax.f32 %v460, %v461
        %v463 = vrot.slane %v462, 2
        %v464 = vmax.f32 %v462, %v463
        %v465 = vrot.slane %v464, 1
        %v466 = vmax.f32 %v464, %v465
        %v467 = vsel %vm445, %v443, -inf
        %v468 = vrot.slane %v467, 4
        %v469 = vmax.f32 %v467, %v468
        %v470 = vrot.slane %v469, 2
        %v471 = vmax.f32 %v469, %v470
        %v472 = vrot.slane %v471, 1
        %v473 = vmax.f32 %v471, %v472
        %v474 = vsub.f32 %v311, %v452
        %v475 = vsub.f32 %v355, %v459
        %v476 = vsub.f32 %v399, %v466
        %v477 = vsub.f32 %v443, %v473
        %v478 = vmul.f32 %v474, 1.442695
        %v479 = vpow.pop %v478
        %v480 = vmul.f32 %v475, 1.442695
        %v481 = vpow.pop %v480
        %v482 = vmul.f32 %v476, 1.442695
        %v483 = vpow.pop %v482
        %v484 = vmul.f32 %v477, 1.442695
        %v485 = vpow.pop %v484
        %v486 = vsel %vm445, %v479, 0.0
        %v487 = vrot.slane %v486, 4
        %v488 = vadd.f32 %v486, %v487
        %v489 = vrot.slane %v488, 2
        %v490 = vadd.f32 %v488, %v489
        %v491 = vrot.slane %v490, 1
        %v492 = vadd.f32 %v490, %v491
        %v493 = vsel %vm445, %v481, 0.0
        %v494 = vrot.slane %v493, 4
        %v495 = vadd.f32 %v493, %v494
        %v496 = vrot.slane %v495, 2
        %v497 = vadd.f32 %v495, %v496
        %v498 = vrot.slane %v497, 1
        %v499 = vadd.f32 %v497, %v498
        %v500 = vsel %vm445, %v483, 0.0
        %v501 = vrot.slane %v500, 4
        %v502 = vadd.f32 %v500, %v501
        %v503 = vrot.slane %v502, 2
        %v504 = vadd.f32 %v502, %v503
        %v505 = vrot.slane %v504, 1
        %v506 = vadd.f32 %v504, %v505
        %v507 = vsel %vm445, %v485, 0.0
        %v508 = vrot.slane %v507, 4
        %v509 = vadd.f32 %v507, %v508
        %v510 = vrot.slane %v509, 2
        %v511 = vadd.f32 %v509, %v510
        %v512 = vrot.slane %v511, 1
        %v513 = vadd.f32 %v511, %v512
        %v514 = vrcp.pop %v492
        %v515 = vmul.f32 %v492, %v514
        %v516 = vsub.f32 1.0, %v515
        %v517 = vmul.f32 %v514, %v516
        %v518 = vadd.f32 %v514, %v517
        %vm519 = vweird.f32 %v492
        %vm520 = vweird.f32 %v514
        %vm521 = vmor %vm519, %vm520
        %v522 = vsel %vm521, %v514, %v518
        %v523 = vand.u32 2147483647, %v492
        %vm524 = vcmp.eq.f32.partialorder %v523, 8.507059e+37
        %v525 = vand.u32 %v492, 2147483648
        %v526 = vor.u32 1.1754944e-38, %v525
        %v527 = vsel %vm524, %v526, %v522
        %v528 = vrcp.pop %v499
        %v529 = vmul.f32 %v499, %v528
        %v530 = vsub.f32 1.0, %v529
        %v531 = vmul.f32 %v528, %v530
        %v532 = vadd.f32 %v528, %v531
        %vm533 = vweird.f32 %v499
        %vm534 = vweird.f32 %v528
        %vm535 = vmor %vm533, %vm534
        %v536 = vsel %vm535, %v528, %v532
        %v537 = vand.u32 2147483647, %v499
        %vm538 = vcmp.eq.f32.partialorder %v537, 8.507059e+37
        %v539 = vand.u32 %v499, 2147483648
        %v540 = vor.u32 1.1754944e-38, %v539
        %v541 = vsel %vm538, %v540, %v536
        %v542 = vrcp.pop %v506
        %v543 = vmul.f32 %v506, %v542
        %v544 = vsub.f32 1.0, %v543
        %v545 = vmul.f32 %v542, %v544
        %v546 = vadd.f32 %v542, %v545
        %vm547 = vweird.f32 %v506
        %vm548 = vweird.f32 %v542
        %vm549 = vmor %vm547, %vm548
        %v550 = vsel %vm549, %v542, %v546
        %v551 = vand.u32 2147483647, %v506
        %vm552 = vcmp.eq.f32.partialorder %v551, 8.507059e+37
        %v553 = vand.u32 %v506, 2147483648
        %v554 = vor.u32 1.1754944e-38, %v553
        %v555 = vsel %vm552, %v554, %v550
        %v556 = vrcp.pop %v513
        %v557 = vmul.f32 %v513, %v556
        %v558 = vsub.f32 1.0, %v557
        %v559 = vmul.f32 %v556, %v558
        %v560 = vadd.f32 %v556, %v559
        %vm561 = vweird.f32 %v513
        %vm562 = vweird.f32 %v556
        %vm563 = vmor %vm561, %vm562
        %v564 = vsel %vm563, %v556, %v560
        %v565 = vand.u32 2147483647, %v513
        %vm566 = vcmp.eq.f32.partialorder %v565, 8.507059e+37
        %v567 = vand.u32 %v513, 2147483648
        %v568 = vor.u32 1.1754944e-38, %v567
        %v569 = vsel %vm566, %v568, %v564
        %v570 = vmul.f32 %v479, %v527
        %v571 = vmul.f32 %v481, %v541
        %v572 = vmul.f32 %v483, %v555
        %v573 = vmul.f32 %v485, %v569
        %v574 = vsel %vm445, %v570, -inf
        %v575 = vrot.slane %v574, 4
        %v576 = vmax.f32 %v574, %v575
        %v577 = vrot.slane %v576, 2
        %v578 = vmax.f32 %v576, %v577
        %v579 = vrot.slane %v578, 1
        %v580 = vmax.f32 %v578, %v579
        %v581 = vsel %vm445, %v571, -inf
        %v582 = vrot.slane %v581, 4
        %v583 = vmax.f32 %v581, %v582
        %v584 = vrot.slane %v583, 2
        %v585 = vmax.f32 %v583, %v584
        %v586 = vrot.slane %v585, 1
        %v587 = vmax.f32 %v585, %v586
        %v588 = vsel %vm445, %v572, -inf
        %v589 = vrot.slane %v588, 4
        %v590 = vmax.f32 %v588, %v589
        %v591 = vrot.slane %v590, 2
        %v592 = vmax.f32 %v590, %v591
        %v593 = vrot.slane %v592, 1
        %v594 = vmax.f32 %v592, %v593
        %v595 = vsel %vm445, %v573, -inf
        %v596 = vrot.slane %v595, 4
        %v597 = vmax.f32 %v595, %v596
        %v598 = vrot.slane %v597, 2
        %v599 = vmax.f32 %v597, %v598
        %v600 = vrot.slane %v599, 1
        %v601 = vmax.f32 %v599, %v600
        %v602 = vsub.f32 %v570, %v580
        %v603 = vsub.f32 %v571, %v587
        %v604 = vsub.f32 %v572, %v594
        %v605 = vsub.f32 %v573, %v601
        %v606 = vmul.f32 %v602, 1.442695
        %v607 = vpow.pop %v606
        %v608 = vmul.f32 %v603, 1.442695
        %v609 = vpow.pop %v608
        %v610 = vmul.f32 %v604, 1.442695
        %v611 = vpow.pop %v610
        %v612 = vmul.f32 %v605, 1.442695
        %v613 = vpow.pop %v612
        %v614 = vsel %vm445, %v607, 0.0
        %v615 = vrot.slane %v614, 4
        %v616 = vadd.f32 %v614, %v615
        %v617 = vrot.slane %v616, 2
        %v618 = vadd.f32 %v616, %v617
        %v619 = vrot.slane %v618, 1
        %v620 = vadd.f32 %v618, %v619
        %v621 = vsel %vm445, %v609, 0.0
        %v622 = vrot.slane %v621, 4
        %v623 = vadd.f32 %v621, %v622
        %v624 = vrot.slane %v623, 2
        %v625 = vadd.f32 %v623, %v624
        %v626 = vrot.slane %v625, 1
        %v627 = vadd.f32 %v625, %v626
        %v628 = vsel %vm445, %v611, 0.0
        %v629 = vrot.slane %v628, 4
        %v630 = vadd.f32 %v628, %v629
        %v631 = vrot.slane %v630, 2
        %v632 = vadd.f32 %v630, %v631
        %v633 = vrot.slane %v632, 1
        %v634 = vadd.f32 %v632, %v633
        %v635 = vsel %vm445, %v613, 0.0
        %v636 = vrot.slane %v635, 4
        %v637 = vadd.f32 %v635, %v636
        %v638 = vrot.slane %v637, 2
        %v639 = vadd.f32 %v637, %v638
        %v640 = vrot.slane %v639, 1
        %v641 = vadd.f32 %v639, %v640
        %v642 = vlog2.pop %v620
        %v643 = vmul.f32 %v642, 0.6931472
        %v644 = vlog2.pop %v627
        %v645 = vmul.f32 %v644, 0.6931472
        %v646 = vlog2.pop %v634
        %v647 = vmul.f32 %v646, 0.6931472
        %v648 = vlog2.pop %v641
        %v649 = vmul.f32 %v648, 0.6931472
        %v650 = vadd.f32 %v580, %v643
        %v651 = vadd.f32 %v587, %v645
        %v652 = vadd.f32 %v594, %v647
        %v653 = vadd.f32 %v601, %v649
        %v654 = vsub.f32 %v570, %v650
        %v655 = vsub.f32 %v571, %v651
        %v656 = vsub.f32 %v572, %v652
        %v657 = vsub.f32 %v573, %v653
        %v658 = vperm.slane %v149, 0
        %v659 = vperm.slane %v149, 1
        %v660 = vperm.slane %v149, 2
        %v661 = vperm.slane %v149, 3
        %vm662 = vcmp.eq.s32.totalorder %v151, %v658
        %vm663 = vcmp.eq.s32.totalorder %v151, %v659
        %vm664 = vcmp.eq.s32.totalorder %v151, %v660
        %vm665 = vcmp.eq.s32.totalorder %v151, %v661
        %v666 = vsel %vm662, %v654, 0.0
        %v667 = vsel %vm663, %v655, 0.0
        %v668 = vsel %vm664, %v656, 0.0
        %v669 = vsel %vm665, %v657, 0.0
        %v670 = vsel %vm445, %v666, 0.0
        %v671 = vrot.slane %v670, 4
        %v672 = vadd.f32 %v670, %v671
        %v673 = vrot.slane %v672, 2
        %v674 = vadd.f32 %v672, %v673
        %v675 = vrot.slane %v674, 1
        %v676 = vadd.f32 %v674, %v675
        %v677 = vsel %vm445, %v667, 0.0
        %v678 = vrot.slane %v677, 4
        %v679 = vadd.f32 %v677, %v678
        %v680 = vrot.slane %v679, 2
        %v681 = vadd.f32 %v679, %v680
        %v682 = vrot.slane %v681, 1
        %v683 = vadd.f32 %v681, %v682
        %v684 = vsel %vm445, %v668, 0.0
        %v685 = vrot.slane %v684, 4
        %v686 = vadd.f32 %v684, %v685
        %v687 = vrot.slane %v686, 2
        %v688 = vadd.f32 %v686, %v687
        %v689 = vrot.slane %v688, 1
        %v690 = vadd.f32 %v688, %v689
        %v691 = vsel %vm445, %v669, 0.0
        %v692 = vrot.slane %v691, 4
        %v693 = vadd.f32 %v691, %v692
        %v694 = vrot.slane %v693, 2
        %v695 = vadd.f32 %v693, %v694
        %v696 = vrot.slane %v695, 1
        %v697 = vadd.f32 %v695, %v696
        %v698 = vsub.f32 0.0, %v676
        %v699 = vsub.f32 0.0, %v683
        %v700 = vsub.f32 0.0, %v690
        %v701 = vsub.f32 0.0, %v697
        %702 = vst [vmem:[%s137] sm:$0xff] %v287
        %703 = vst [vmem:[%s137 + $0x8] sm:$0xff] %v331
        %704 = vst [vmem:[%s137 + $0x10] sm:$0xff] %v375
        %705 = vst [vmem:[%s137 + $0x18] sm:$0xff] %v419
        %706 = vst [vmem:[%s137 + $0x20] sm:$0xff] %v290
        %707 = vst [vmem:[%s137 + $0x28] sm:$0xff] %v334
        %708 = vst [vmem:[%s137 + $0x30] sm:$0xff] %v378
        %709 = vst [vmem:[%s137 + $0x38] sm:$0xff] %v422
        %710 = vst [vmem:[%s137 + $0x40] sm:$0xff] %v293
        %711 = vst [vmem:[%s137 + $0x48] sm:$0xff] %v337
        %712 = vst [vmem:[%s137 + $0x50] sm:$0xff] %v381
        %713 = vst [vmem:[%s137 + $0x58] sm:$0xff] %v425
        %714 = vst [vmem:[%s137 + $0x60] sm:$0xff] %v296
        %715 = vst [vmem:[%s137 + $0x68] sm:$0xff] %v340
        %716 = vst [vmem:[%s137 + $0x70] sm:$0xff] %v384
        %717 = vst [vmem:[%s137 + $0x78] sm:$0xff] %v428
        %718 = vst [vmem:[%s137 + $0x80] sm:$0xff] %v299
        %719 = vst [vmem:[%s137 + $0x88] sm:$0xff] %v343
        %720 = vst [vmem:[%s137 + $0x90] sm:$0xff] %v387
        %721 = vst [vmem:[%s137 + $0x98] sm:$0xff] %v431
        %722 = vst [vmem:[%s137 + $0xa0] sm:$0xff] %v302
        %723 = vst [vmem:[%s137 + $0xa8] sm:$0xff] %v346
        %724 = vst [vmem:[%s137 + $0xb0] sm:$0xff] %v390
        %725 = vst [vmem:[%s137 + $0xb8] sm:$0xff] %v434
        %726 = vst [vmem:[%s137 + $0xc0] sm:$0xff] %v305
        %727 = vst [vmem:[%s137 + $0xc8] sm:$0xff] %v349
        %728 = vst [vmem:[%s137 + $0xd0] sm:$0xff] %v393
        %729 = vst [vmem:[%s137 + $0xd8] sm:$0xff] %v437
        %730 = vst [vmem:[%s137 + $0xe0] sm:$0xff] %v308
        %731 = vst [vmem:[%s137 + $0xe8] sm:$0xff] %v352
        %732 = vst [vmem:[%s137 + $0xf0] sm:$0xff] %v396
        %733 = vst [vmem:[%s137 + $0xf8] sm:$0xff] %v440
        %734 = vst [vmem:[%s137 + $0x100] sm:$0xff] %v311
        %735 = vst [vmem:[%s137 + $0x108] sm:$0xff] %v355
        %736 = vst [vmem:[%s137 + $0x110] sm:$0xff] %v399
        %737 = vst [vmem:[%s137 + $0x118] sm:$0xff] %v443
        %738 = vst [vmem:[%s137 + $0x100] sm:$0xf] %v570
        %739 = vst [vmem:[%s137 + $0x108] sm:$0xf] %v571
        %740 = vst [vmem:[%s137 + $0x110] sm:$0xf] %v572
        %741 = vst [vmem:[%s137 + $0x118] sm:$0xf] %v573
        %v746 = vrot.slane %v699, 7
        %v747 = vrot.slane %v700, 6
        %v748 = vrot.slane %v701, 5
        %vm749 = vcmask 1040384
        %v750 = vsel %vm749, %v698, %v746
        %vm751 = vcmask 1042434
        %v752 = vsel %vm751, %v747, %v748
        %vm753 = vcmask 1041408
        %v754 = vsel %vm753, %v750, %v752
        %v756 = vlaneseq
        %vm757 = vcmp.ge.s32.totalorder %v756, 0
        %vm758 = vcmp.lt.s32.totalorder %v756, 512
        %vm759 = vmand %vm757, %vm758
        %s760 = scalar_lea.vmem %s137, 260 [#allocation2]
        %761 = vst.msk [vmem:[%s760] ss:$8 sm:$0xf] %vm759, %v754
        %762 = vst.msk [vmem:[%s760] ss:$8 sm:$0x0] %vm759, %v754
        %s763 = sand.u32 %s71, 1
        %s764 = scalar_lea.sflag [#allocation3], %s763
        %s765 = sand.u32 %s71, 1
        %s766 = smul.addr %s765, 288
        %s767 = scalar_lea.vmem [#allocation2], %s766
        // Predicated region
        $region29: #{tpu_custom_call.1} parent=27 // pred_check
          %p768 = pneg %p81
        $region30: #{tpu_custom_call.1} parent=27 // pred_check_branch
          %770 = sbr.rel (%p768) target = $region32
        $region31: #{tpu_custom_call.1} parent=27 // pred_region
          %s771 = smul.u32 4, %s16
          %773 = vsyncadd %s764, 0
          %s774 = smul.addr %s771, 8
          %s775 = scalar_lea.hbm %s2, %s774
          %s776 = sshll.u32 %s767, 4
          %s777 = int_to_ptr.vmem [resolvable:$true] %s776
          %s778 = sshll.u32 %s775, 4
          %s779 = int_to_ptr.hbm [resolvable:$true] %s778
          %784 = dma.vmem_to_hbm [thread:$0]  %s777, 4608, %s779, %s764, 512, 1024, 32
        $region32: #{tpu_custom_call.1} parent=27 // pred_fallthru
          _
      $region28: #{tpu_custom_call.1} parent=5 // pred_fallthru
        _
      %p785 = scmp.le.s32.totalorder 2, %s11
      // Predicated region
      $region33: #{tpu_custom_call.1} parent=5 // pred_check
        %p786 = pneg %p785
      $region34: #{tpu_custom_call.1} parent=5 // pred_check_branch
        %788 = sbr.rel (%p786) target = $region36
      $region35: #{tpu_custom_call.1} parent=5 // pred_region
        %s789 = ssub.s32 %s11, 2
        // Predicated region
        $region37: #{tpu_custom_call.1} parent=35 // pred_check
          %p790 = pneg %p87
        $region38: #{tpu_custom_call.1} parent=35 // pred_check_branch
          %792 = sbr.rel (%p790) target = $region40
        $region39: #{tpu_custom_call.1} parent=35 // pred_region
          %s793 = sand.u32 %s72, 1
          %s794 = scalar_lea.sflag [#allocation3], %s793
          %s795 = sand.u32 %s72, 1
          %s796 = smul.addr %s795, 288
          %s797 = scalar_lea.vmem [#allocation2], %s796
          %799 = dma.done %s794, 4608
        $region40: #{tpu_custom_call.1} parent=35 // pred_fallthru
          _
      $region36: #{tpu_custom_call.1} parent=5 // pred_fallthru
        _
    $region6: #{tpu_custom_call.1} parent=1 // loop_footer
      %s15 = sadd.s32 1, %s11
    $region7: #{tpu_custom_call.1} parent=1 // loop_footer_branch
      %10 = sbr.rel target = $region3
    $region8: #{tpu_custom_call.1} parent=1 // loop_exit
      _
    %800 = vsyncpa [#allocation3], 1
    %s801 = scalar_lea.sflag [#allocation3], 1
    %802 = vsyncpa %s801, 1

</llo_original>
